<compile_context>
chip_gen: v7x
topology: tpu7x:2x2x1
jax: 0.10.0
libtpu: 0.0.40
codegen_flags: <defaults>
</compile_context>

<pallas_src>
import jax
import jax.numpy as jnp
from jax.experimental import pallas as pl
from jax.experimental.pallas import tpu as pltpu

_LANE = 128
_SMALL_BATCH_MAX = 256  # <= this: single whole-array invocation (latency path)


def _round_up(n, m):
    return ((n + m - 1) // m) * m


def _cdiv(a, b):
    return (a + b - 1) // b


# ----------------------------------------------------------------------------
# Kernel body: relu(x @ W1 + b1) @ W2 + b2.  bf16 into the MXU, f32 accumulate,
# narrow (output_size-wide) store back to HBM.
# ----------------------------------------------------------------------------
def _qnet_kernel(x_ref, w1_ref, b1_ref, w2_ref, b2_ref, out_ref):
    x = x_ref[...].astype(jnp.bfloat16)
    h = jnp.dot(x, w1_ref[...], preferred_element_type=jnp.float32)
    h = jnp.maximum(h + b1_ref[...], 0.0)                 # bias [1,Hp] + ReLU (f32)
    y = jnp.dot(h.astype(jnp.bfloat16), w2_ref[...],
                preferred_element_type=jnp.float32)
    y = y + b2_ref[...]
    # Only the real output columns leave VMEM.
    out_ref[...] = y[:, : out_ref.shape[1]].astype(out_ref.dtype)


# ----------------------------------------------------------------------------
# One-time parameter prep: pad hidden / output dims to lane-dense (128) widths.
# Padded columns are zero so real-column results are unchanged (ReLU(0)=0 and
# zero rows of W2 contribute nothing).  Weights in bf16, biases in f32.
# ----------------------------------------------------------------------------
def pad_params(w1, b1, w2, b2):
    """w1:[K,H], b1:[1,H], w2:[H,O], b2:[1,O] -> padded (bf16 weights, f32 bias)."""
    K, H = w1.shape
    _, O = w2.shape
    Hp = _round_up(H, _LANE)
    Op = _round_up(O, _LANE)
    w1p = jnp.zeros((K, Hp), jnp.bfloat16).at[:, :H].set(w1.astype(jnp.bfloat16))
    b1p = jnp.zeros((1, Hp), jnp.float32).at[:, :H].set(b1.astype(jnp.float32))
    w2p = jnp.zeros((Hp, Op), jnp.bfloat16).at[:H, :O].set(w2.astype(jnp.bfloat16))
    b2p = jnp.zeros((1, Op), jnp.float32).at[:, :O].set(b2.astype(jnp.float32))
    return w1p, b1p, w2p, b2p


# ----------------------------------------------------------------------------
# Small-batch path: single invocation, whole-array VMEM refs, no grid, no pads.
# ----------------------------------------------------------------------------
def _call_whole(x, w1p, b1p, w2p, b2p, output_size):
    B = x.shape[0]
    return pl.pallas_call(
        _qnet_kernel,
        out_shape=jax.ShapeDtypeStruct((B, output_size), jnp.float32),
        in_specs=[pl.BlockSpec(memory_space=pltpu.MemorySpace.VMEM)] * 5,
        out_specs=pl.BlockSpec(memory_space=pltpu.MemorySpace.VMEM),
    )(x, w1p, b1p, w2p, b2p)


# ----------------------------------------------------------------------------
# Large-batch path: grid over batch tiles (cdiv grid, no batch padding).
# Batch axis is "parallel" so v7x shards it across its 2 TensorCores.
# Weights/biases have constant block index and stay resident; x is triple-
# buffered to hide DMA issue latency under the matmuls.
# ----------------------------------------------------------------------------
def _call_gridded(x, w1p, b1p, w2p, b2p, output_size, tb):
    B, K = x.shape
    Hp = w1p.shape[1]
    Op = w2p.shape[1]
    return pl.pallas_call(
        _qnet_kernel,
        out_shape=jax.ShapeDtypeStruct((B, output_size), jnp.float32),
        grid_spec=pltpu.PrefetchScalarGridSpec(
            num_scalar_prefetch=0,
            grid=(_cdiv(B, tb),),
            in_specs=[
                pl.BlockSpec((tb, K), lambda i: (i, 0),
                             pipeline_mode=pl.Buffered(3)),
                pl.BlockSpec((K, Hp), lambda i: (0, 0)),
                pl.BlockSpec((1, Hp), lambda i: (0, 0)),
                pl.BlockSpec((Hp, Op), lambda i: (0, 0)),
                pl.BlockSpec((1, Op), lambda i: (0, 0)),
            ],
            out_specs=pl.BlockSpec((tb, output_size), lambda i: (i, 0)),
        ),
        compiler_params=pltpu.CompilerParams(
            dimension_semantics=("parallel",),
        ),
    )(x, w1p, b1p, w2p, b2p)


# ----------------------------------------------------------------------------
# Public forward.
# ----------------------------------------------------------------------------
def linear_qnet_forward(x, w1p, b1p, w2p, b2p, output_size, *, batch_tile=1024):
    B = x.shape[0]
    if B <= _SMALL_BATCH_MAX:
        return _call_whole(x, w1p, b1p, w2p, b2p, output_size)
    # Ensure >=2 grid tiles (v7x megacore) while keeping tiles <= batch_tile.
    n_tiles = max(2, _cdiv(B, batch_tile))
    tb = min(_round_up(_cdiv(B, n_tiles), 8), _round_up(B, 8))
    return _call_gridded(x, w1p, b1p, w2p, b2p, output_size, tb)


# ----------------------------------------------------------------------------
# Init matching torch.nn.Linear defaults (U(-1/sqrt(fan_in), 1/sqrt(fan_in))),
# stored transposed ([in, out]) so the kernel computes plain x @ W.
# ----------------------------------------------------------------------------
def init_linear_params(key, fan_in, fan_out):
    k_w, k_b = jax.random.split(key)
    bound = 1.0 / jnp.sqrt(jnp.float32(fan_in))
    w = jax.random.uniform(k_w, (fan_in, fan_out), jnp.float32, -bound, bound)
    b = jax.random.uniform(k_b, (1, fan_out), jnp.float32, -bound, bound)
    return w, b


def reference_forward(x, w1, b1, w2, b2):
    h = jnp.maximum(x @ w1 + b1, 0.0)
    return h @ w2 + b2


# TODO(synk): Linear_QNet.save (torch.save to ./model) is file I/O, not part of
# the forward pass; intentionally not translated.

if __name__ == "__main__":
    # Small DQN-ish sizes: 16-feature state, hidden=32, 4 actions, batch=8.
    batch, input_size, hidden_size, output_size = 8, 16, 32, 4

    key = jax.random.PRNGKey(0)
    k_x, k_l1, k_l2, k_xl = jax.random.split(key, 4)

    x = jax.random.normal(k_x, (batch, input_size), jnp.float32)
    w1, b1 = init_linear_params(k_l1, input_size, hidden_size)
    w2, b2 = init_linear_params(k_l2, hidden_size, output_size)

    # One-time parameter prep.
    w1p, b1p, w2p, b2p = pad_params(w1, b1, w2, b2)

    # --- small-batch (latency) path ------------------------------------------
    out = linear_qnet_forward(x, w1p, b1p, w2p, b2p, output_size)
    out = jax.block_until_ready(out)
    ref = reference_forward(x, w1, b1, w2, b2)
    assert out.shape == (batch, output_size)
    # bf16 MXU inputs with f32 accumulation: loosened tolerance vs f32 reference.
    assert jnp.allclose(out, ref, atol=6e-2, rtol=5e-2), "small-batch mismatch"

    # --- replay-batch (gridded, batch-parallel) path --------------------------
    big_batch = 512
    xl = jax.random.normal(k_xl, (big_batch, input_size), jnp.float32)
    out_l = jax.block_until_ready(
        linear_qnet_forward(xl, w1p, b1p, w2p, b2p, output_size))
    ref_l = reference_forward(xl, w1, b1, w2, b2)
    assert out_l.shape == (big_batch, output_size)
    assert jnp.allclose(out_l, ref_l, atol=6e-2, rtol=5e-2), "gridded mismatch"

    print("KERNEL_OK")
</pallas_src>

<mosaic_0001>
module attributes {stable_mosaic.version = 11 : i64} {
  func.func @_qnet_kernel(%arg0: memref<8x16xf32, #tpu.memory_space<vmem>>, %arg1: memref<16x128xbf16, #tpu.memory_space<vmem>>, %arg2: memref<1x128xf32, #tpu.memory_space<vmem>>, %arg3: memref<128x128xbf16, #tpu.memory_space<vmem>>, %arg4: memref<1x128xf32, #tpu.memory_space<vmem>>, %arg5: memref<8x4xf32, #tpu.memory_space<vmem>>) attributes {dimension_semantics = [], scalar_prefetch = 0 : i64, scratch_operands = 0 : i64, tpu.core_type = #tpu.core_type<tc>} {
    %c0 = arith.constant 0 : index
    %c0_0 = arith.constant 0 : index
    %0 = vector.load %arg0[%c0, %c0_0] : memref<8x16xf32, #tpu.memory_space<vmem>>, vector<8x16xf32>
    %1 = arith.truncf %0 : vector<8x16xf32> to vector<8x16xbf16>
    %c0_1 = arith.constant 0 : index
    %c0_2 = arith.constant 0 : index
    %2 = vector.load %arg1[%c0_1, %c0_2] : memref<16x128xbf16, #tpu.memory_space<vmem>>, vector<16x128xbf16>
    %cst = arith.constant dense<0.000000e+00> : vector<8x128xf32>
    %3 = tpu.matmul %1, %2, %cst {dimension_numbers = #tpu.dot_dimension_numbers<[1], [0], [0], [1], [0, 0, 1, 1], [], []>} : vector<8x16xbf16>, vector<16x128xbf16>, vector<8x128xf32> -> vector<8x128xf32>
    %c0_3 = arith.constant 0 : index
    %c0_4 = arith.constant 0 : index
    %4 = vector.load %arg2[%c0_3, %c0_4] : memref<1x128xf32, #tpu.memory_space<vmem>>, vector<1x128xf32>
    %5 = vector.broadcast %4 : vector<1x128xf32> to vector<8x128xf32>
    %6 = arith.addf %3, %5 : vector<8x128xf32>
    %cst_5 = arith.constant 0.000000e+00 : f32
    %7 = vector.broadcast %cst_5 : f32 to vector<8x128xf32>
    %8 = arith.maximumf %6, %7 : vector<8x128xf32>
    %9 = arith.truncf %8 : vector<8x128xf32> to vector<8x128xbf16>
    %c0_6 = arith.constant 0 : index
    %c0_7 = arith.constant 0 : index
    %10 = vector.load %arg3[%c0_6, %c0_7] : memref<128x128xbf16, #tpu.memory_space<vmem>>, vector<128x128xbf16>
    %cst_8 = arith.constant dense<0.000000e+00> : vector<8x128xf32>
    %11 = tpu.matmul %9, %10, %cst_8 {dimension_numbers = #tpu.dot_dimension_numbers<[1], [0], [0], [1], [0, 0, 1, 1], [], []>} : vector<8x128xbf16>, vector<128x128xbf16>, vector<8x128xf32> -> vector<8x128xf32>
    %c0_9 = arith.constant 0 : index
    %c0_10 = arith.constant 0 : index
    %12 = vector.load %arg4[%c0_9, %c0_10] : memref<1x128xf32, #tpu.memory_space<vmem>>, vector<1x128xf32>
    %13 = vector.broadcast %12 : vector<1x128xf32> to vector<8x128xf32>
    %14 = arith.addf %11, %13 : vector<8x128xf32>
    %15 = vector.extract_strided_slice %14 {offsets = [0, 0], sizes = [8, 4], strides = [1, 1]} : vector<8x128xf32> to vector<8x4xf32>
    %c0_11 = arith.constant 0 : index
    %c0_12 = arith.constant 0 : index
    %16 = vector.load %arg5[%c0_11, %c0_12] : memref<8x4xf32, #tpu.memory_space<vmem>>, vector<8x4xf32>
    tpu.vector_store %arg5[%c0_11, %c0_12], %15 {strides = array<i32>} : memref<8x4xf32, #tpu.memory_space<vmem>>, vector<8x4xf32>,
    return
  }
}

</mosaic_0001>

<llo_original>
// kernel: tpu_custom_call.1
$region0: #{tpu_custom_call.1}
  #allocation0 [shape = 'u32[]', space=smem, size = 0x4, offset = 0x4, fixed_abs, tag = 'smem constant byte address 0x4 - core index']
  #allocation1 [shape = 'u32[144,128]{1,0:T(1,128)}', space=vmem, size = 0x12000, scoped, tag = 'internal scratch']
  %s0 = inlined_call_operand.hbm [shape: f32[8,16], index: 0, kind: input, shape index: {}]
  %s1 = inlined_call_operand.hbm [shape: bf16[16,128], index: 1, kind: input, shape index: {}]
  %s2 = inlined_call_operand.vmem [shape: f32[1,128], index: 2, kind: input, shape index: {}]
  %s3 = inlined_call_operand.hbm [shape: bf16[128,128], index: 3, kind: input, shape index: {}]
  %s4 = inlined_call_operand.vmem [shape: f32[1,128], index: 4, kind: input, shape index: {}]
  %s5 = inlined_call_operand.vmem [shape: f32[8,4], index: 5, kind: output, shape index: {}]
  %s6 = sld [smem:[#allocation0]]
  $region42: #{tpu_custom_call.1} parent=0
    _
  %s8 = ssub.s32 1, %s6
  %s9 = scalar_select 0, %s8, %s6
  $region1: #{tpu_custom_call.1} parent=0
    #allocation2 [shape = 'u8[4096]{0}', space=vmem, size = 0x1000, scoped, tag = 'input window, operand 0, single buffered']
    #allocation3 [shape = 's32[1]{0}', space=sflag, size = 0x4, scoped, tag = 'scoped memory for tpu_custom_call.1']
    #allocation4 [shape = 'u8[4096]{0}', space=vmem, size = 0x1000, scoped, tag = 'input window, operand 1, single buffered']
    #allocation5 [shape = 's32[1]{0}', space=sflag, size = 0x4, scoped, tag = 'scoped memory for tpu_custom_call.1']
    #allocation6 [shape = 'u8[32768]{0}', space=vmem, size = 0x8000, scoped, tag = 'input window, operand 3, single buffered']
    %10 = vsyncpa [#allocation3], 0
    %11 = vsyncpa [#allocation5], 0
    // Predicated region
    $region2: #{tpu_custom_call.1} parent=1 // pred_check
      _
    $region3: #{tpu_custom_call.1} parent=1 // pred_check_branch
      %13 = sbr.rel (0) target = $region5
    $region4: #{tpu_custom_call.1} parent=1 // pred_region
      %s15 = ssub.s32 128, 128
      %16 = vsyncadd [#allocation3], %s15
      %s18 = sshll.u32 [#allocation2], 4
      %s19 = int_to_ptr.vmem [resolvable:$true] %s18
      %21 = dma.hbm_to_vmem [thread:$0]  %s0, 128, %s19, [#allocation3]
    $region5: #{tpu_custom_call.1} parent=1 // pred_fallthru
      _
    // Predicated region
    $region6: #{tpu_custom_call.1} parent=1 // pred_check
      _
    $region7: #{tpu_custom_call.1} parent=1 // pred_check_branch
      %23 = sbr.rel (0) target = $region9
    $region8: #{tpu_custom_call.1} parent=1 // pred_region
      %s25 = ssub.s32 128, 128
      %26 = vsyncadd [#allocation5], %s25
      %s27 = sshll.u32 [#allocation4], 4
      %s28 = int_to_ptr.vmem [resolvable:$true] %s27
      %33 = dma.hbm_to_vmem [thread:$0]  %s1, 128, %s28, [#allocation5], 64, 64, 4
    $region9: #{tpu_custom_call.1} parent=1 // pred_fallthru
      _
    // Predicated region
    $region10: #{tpu_custom_call.1} parent=1 // pred_check
      _
    $region11: #{tpu_custom_call.1} parent=1 // pred_check_branch
      %35 = sbr.rel (0) target = $region13
    $region12: #{tpu_custom_call.1} parent=1 // pred_region
      _
    $region13: #{tpu_custom_call.1} parent=1 // pred_fallthru
      _
    // Predicated region
    $region14: #{tpu_custom_call.1} parent=1 // pred_check
      _
    $region15: #{tpu_custom_call.1} parent=1 // pred_check_branch
      %37 = sbr.rel (0) target = $region17
    $region16: #{tpu_custom_call.1} parent=1 // pred_region
      %s39 = ssub.s32 1024, 1024
      %40 = vsyncadd [#allocation5], %s39
      %s41 = sshll.u32 [#allocation6], 4
      %s42 = int_to_ptr.vmem [resolvable:$true] %s41
      %47 = dma.hbm_to_vmem [thread:$0]  %s3, 1024, %s42, [#allocation5], 64, 64, 4
    $region17: #{tpu_custom_call.1} parent=1 // pred_fallthru
      _
    // Predicated region
    $region18: #{tpu_custom_call.1} parent=1 // pred_check
      _
    $region19: #{tpu_custom_call.1} parent=1 // pred_check_branch
      %49 = sbr.rel (0) target = $region21
    $region20: #{tpu_custom_call.1} parent=1 // pred_region
      _
    $region21: #{tpu_custom_call.1} parent=1 // pred_fallthru
      _
    // Predicated region
    $region22: #{tpu_custom_call.1} parent=1 // pred_check
      _
    $region23: #{tpu_custom_call.1} parent=1 // pred_check_branch
      %51 = sbr.rel (0) target = $region25
    $region24: #{tpu_custom_call.1} parent=1 // pred_region
      %52 = dma.done [#allocation3], 128
    $region25: #{tpu_custom_call.1} parent=1 // pred_fallthru
      _
    // Predicated region
    $region26: #{tpu_custom_call.1} parent=1 // pred_check
      _
    $region27: #{tpu_custom_call.1} parent=1 // pred_check_branch
      %54 = sbr.rel (0) target = $region29
    $region28: #{tpu_custom_call.1} parent=1 // pred_region
      %55 = dma.done [#allocation5], 128
    $region29: #{tpu_custom_call.1} parent=1 // pred_fallthru
      _
    // Predicated region
    $region30: #{tpu_custom_call.1} parent=1 // pred_check
      _
    $region31: #{tpu_custom_call.1} parent=1 // pred_check_branch
      %57 = sbr.rel (0) target = $region33
    $region32: #{tpu_custom_call.1} parent=1 // pred_region
      %58 = dma.done [#allocation5], 1024
    $region33: #{tpu_custom_call.1} parent=1 // pred_fallthru
      _
    %v60 = vld [vmem:[#allocation2] sm:$0xff]
    %v61 = vpack.c.bf16 %v60, %v60
    %v62 = vld [vmem:[#allocation4] sm:$0xf]
    %v63 = vld [vmem:[#allocation4 + $0x4] sm:$0xf]
    %v64 = vld [vmem:[%s2] sm:$0x1]
    %v66 = vlaneseq
    %v67 = vshrl.u32 %v66, 7
    %v68 = vsub.s32 0, %v67
    %v69 = vrot.slane %v64, %v68
    %v73 = vunpack.c.l.b16 %v62
    %v74 = vunpack.c.l.b16 %v63
    %v75 = vpack.c.b16 %v74, %v73
    %vm77 = vcmask 130048
    %v79 = vsel %vm77, %v61, 0
    %81 = vmatprep.subr.bf16.mxu0 0
    %82 = vmatpush1.bf16.msra.mxu0 %v75
    %83 = vmatprep.subr.bf16.mxu0 0
    %84 = vmatpush1.bf16.msra.mxu0 0
    %85 = vmatprep.subr.bf16.mxu0 0
    %86 = vmatpush1.bf16.msra.mxu0 0
    %87 = vmatprep.subr.bf16.mxu0 0
    %88 = vmatpush1.bf16.msra.mxu0 0
    %89 = vmatprep.subr.bf16.mxu0 0
    %90 = vmatpush1.bf16.msra.mxu0 0
    %91 = vmatprep.subr.bf16.mxu0 0
    %92 = vmatpush1.bf16.msra.mxu0 0
    %93 = vmatprep.subr.bf16.mxu0 0
    %94 = vmatpush1.bf16.msra.mxu0 0
    %95 = vmatprep.subr.bf16.mxu0 0
    %96 = vmatpush1.bf16.msra.mxu0 0
    %97 = vmatprep.subr.bf16.mxu0 0
    %98 = vmatpush1.bf16.msra.mxu0 0
    %99 = vmatprep.subr.bf16.mxu0 0
    %100 = vmatpush1.bf16.msra.mxu0 0
    %101 = vmatprep.subr.bf16.mxu0 0
    %102 = vmatpush1.bf16.msra.mxu0 0
    %103 = vmatprep.subr.bf16.mxu0 0
    %104 = vmatpush1.bf16.msra.mxu0 0
    %105 = vmatprep.subr.bf16.mxu0 0
    %106 = vmatpush1.bf16.msra.mxu0 0
    %107 = vmatprep.subr.bf16.mxu0 0
    %108 = vmatpush1.bf16.msra.mxu0 0
    %109 = vmatprep.subr.bf16.mxu0 0
    %110 = vmatpush1.bf16.msra.mxu0 0
    %111 = vmatprep.subr.bf16.mxu0 0
    %112 = vmatpush1.bf16.msra.mxu0 0
    %113 = vmatprep.mubr.bf16.mxu0 0
    %114 = vmatmul.mubr.bf16.gmra.mrb[0].mxu0 %v79
    %v115 = vpop.f32.mrb[0].mxu0
    %v116 = vadd.f32 %v69, %v115
    %v117 = vpop.f32.mrb[0].mxu0
    %v118 = vpop.f32.mrb[0].mxu0
    %v119 = vpop.f32.mrb[0].mxu0
    %120 = vdwg.mxu0
    %v121 = vmax.f32 %v116, 0.0
    %v122 = vpack.c.bf16 %v121, %v121
    %v123 = vld [vmem:[#allocation6] sm:$0xf]
    %v124 = vld [vmem:[#allocation6 + $0x4] sm:$0xf]
    %v125 = vld [vmem:[#allocation6 + $0x8] sm:$0xf]
    %v126 = vld [vmem:[#allocation6 + $0xc] sm:$0xf]
    %v127 = vld [vmem:[#allocation6 + $0x10] sm:$0xf]
    %v128 = vld [vmem:[#allocation6 + $0x14] sm:$0xf]
    %v129 = vld [vmem:[#allocation6 + $0x18] sm:$0xf]
    %v130 = vld [vmem:[#allocation6 + $0x1c] sm:$0xf]
    %v131 = vld [vmem:[#allocation6 + $0x20] sm:$0xf]
    %v132 = vld [vmem:[#allocation6 + $0x24] sm:$0xf]
    %v133 = vld [vmem:[#allocation6 + $0x28] sm:$0xf]
    %v134 = vld [vmem:[#allocation6 + $0x2c] sm:$0xf]
    %v135 = vld [vmem:[#allocation6 + $0x30] sm:$0xf]
    %v136 = vld [vmem:[#allocation6 + $0x34] sm:$0xf]
    %v137 = vld [vmem:[#allocation6 + $0x38] sm:$0xf]
    %v138 = vld [vmem:[#allocation6 + $0x3c] sm:$0xf]
    %v139 = vld [vmem:[%s4] sm:$0x1]
    %v141 = vlaneseq
    %v142 = vshrl.u32 %v141, 7
    %v143 = vsub.s32 0, %v142
    %v144 = vrot.slane %v139, %v143
    %v162 = vunpack.c.l.b16 %v123
    %v163 = vunpack.c.l.b16 %v124
    %v164 = vunpack.c.l.b16 %v125
    %v165 = vunpack.c.l.b16 %v126
    %v166 = vunpack.c.l.b16 %v127
    %v167 = vunpack.c.l.b16 %v128
    %v168 = vunpack.c.l.b16 %v129
    %v169 = vunpack.c.l.b16 %v130
    %v170 = vunpack.c.l.b16 %v131
    %v171 = vunpack.c.l.b16 %v132
    %v172 = vunpack.c.l.b16 %v133
    %v173 = vunpack.c.l.b16 %v134
    %v174 = vunpack.c.l.b16 %v135
    %v175 = vunpack.c.l.b16 %v136
    %v176 = vunpack.c.l.b16 %v137
    %v177 = vunpack.c.l.b16 %v138
    %v178 = vpack.c.b16 %v163, %v162
    %v179 = vpack.c.b16 %v165, %v164
    %v180 = vpack.c.b16 %v167, %v166
    %v181 = vpack.c.b16 %v169, %v168
    %v182 = vpack.c.b16 %v171, %v170
    %v183 = vpack.c.b16 %v173, %v172
    %v184 = vpack.c.b16 %v175, %v174
    %v185 = vpack.c.b16 %v177, %v176
    %194 = vmatprep.subr.bf16.mxu0 0
    %195 = vmatpush1.bf16.msra.mxu0 %v178
    %196 = vmatprep.subr.bf16.mxu0 0
    %197 = vmatpush1.bf16.msra.mxu0 %v179
    %198 = vmatprep.subr.bf16.mxu0 0
    %199 = vmatpush1.bf16.msra.mxu0 %v180
    %200 = vmatprep.subr.bf16.mxu0 0
    %201 = vmatpush1.bf16.msra.mxu0 %v181
    %202 = vmatprep.subr.bf16.mxu0 0
    %203 = vmatpush1.bf16.msra.mxu0 %v182
    %204 = vmatprep.subr.bf16.mxu0 0
    %205 = vmatpush1.bf16.msra.mxu0 %v183
    %206 = vmatprep.subr.bf16.mxu0 0
    %207 = vmatpush1.bf16.msra.mxu0 %v184
    %208 = vmatprep.subr.bf16.mxu0 0
    %209 = vmatpush1.bf16.msra.mxu0 %v185
    %210 = vmatprep.subr.bf16.mxu0 0
    %211 = vmatpush1.bf16.msra.mxu0 0
    %212 = vmatprep.subr.bf16.mxu0 0
    %213 = vmatpush1.bf16.msra.mxu0 0
    %214 = vmatprep.subr.bf16.mxu0 0
    %215 = vmatpush1.bf16.msra.mxu0 0
    %216 = vmatprep.subr.bf16.mxu0 0
    %217 = vmatpush1.bf16.msra.mxu0 0
    %218 = vmatprep.subr.bf16.mxu0 0
    %219 = vmatpush1.bf16.msra.mxu0 0
    %220 = vmatprep.subr.bf16.mxu0 0
    %221 = vmatpush1.bf16.msra.mxu0 0
    %222 = vmatprep.subr.bf16.mxu0 0
    %223 = vmatpush1.bf16.msra.mxu0 0
    %224 = vmatprep.subr.bf16.mxu0 0
    %225 = vmatpush1.bf16.msra.mxu0 0
    %226 = vmatprep.mubr.bf16.mxu0 0
    %227 = vmatmul.mubr.bf16.gmra.mrb[0].mxu0 %v122
    %v228 = vpop.f32.mrb[0].mxu0
    %v229 = vadd.f32 %v144, %v228
    %v230 = vpop.f32.mrb[0].mxu0
    %v231 = vpop.f32.mrb[0].mxu0
    %v232 = vpop.f32.mrb[0].mxu0
    %233 = vdwg.mxu0
    %vm234 = vcmask 31744
    %235 = vst.msk [vmem:[%s5] sm:$0xff] %vm234, %v229
    // Predicated region
    $region34: #{tpu_custom_call.1} parent=1 // pred_check
      _
    $region35: #{tpu_custom_call.1} parent=1 // pred_check_branch
      %237 = sbr.rel (0) target = $region37
    $region36: #{tpu_custom_call.1} parent=1 // pred_region
      _
    $region37: #{tpu_custom_call.1} parent=1 // pred_fallthru
      _
    // Predicated region
    $region38: #{tpu_custom_call.1} parent=1 // pred_check
      _
    $region39: #{tpu_custom_call.1} parent=1 // pred_check_branch
      %239 = sbr.rel (0) target = $region41
    $region40: #{tpu_custom_call.1} parent=1 // pred_region
      _
    $region41: #{tpu_custom_call.1} parent=1 // pred_fallthru
      _
    %240 = vsyncpa [#allocation3], 1
    %241 = vsyncpa [#allocation5], 1

</llo_original>
